<compile_context>
chip_gen: v5e
topology: v5e:2x2
jax: 0.10.0
libtpu: 0.0.40
codegen_flags: <defaults>
</compile_context>

<pallas_src>
import functools

import jax
import jax.numpy as jnp
from jax.experimental import pallas as pl
from jax.experimental.pallas import tpu as pltpu


def _accumulate(acc_ref, vals, tile_m):
    """Add a (N, tile_m) tile into the lane-wide (N, 128) accumulator.

    Tree-reduces the tile_m/128 lane chunks (log depth, lets the 4 VALU slots
    co-issue) and touches acc_ref exactly once per call.
    """
    if tile_m % 128 == 0:
        chunks = [vals[:, c * 128:(c + 1) * 128] for c in range(tile_m // 128)]
        while len(chunks) > 1:
            nxt = [chunks[i] + chunks[i + 1] for i in range(0, len(chunks) - 1, 2)]
            if len(chunks) % 2:
                nxt.append(chunks[-1])
            chunks = nxt
        acc_ref[...] += chunks[0]
    else:  # only possible when tile_m == m < 128
        acc_ref[:, :1] += jnp.sum(vals, axis=1, keepdims=True)


def _dpsh_kernel(ucnn_ref, ut_ref, s_ref, pair_out_ref, acc_ref,
                 *, n, m, tile_m, tiles_per_slice, needs_mask):
    """Grid = (parallel slice p, M-tile j within slice).

    ucnn_ref     : (N, B)        full U_cnn block (resident), f32
    ut_ref       : (B, TM)       pre-transposed tile of U (stored dtype)
    s_ref        : (N, TM)       matching tile of S (stored dtype, 0/1)
    pair_out_ref : (1, 1, 128)   per-slice lane-wise partial sums of the pair loss
    acc_ref      : (N, 128) VMEM running per-lane partial sums
    """
    p = pl.program_id(0)
    j = pl.program_id(1)

    @pl.when(j == 0)
    def _():
        acc_ref[...] = jnp.zeros_like(acc_ref)

    # theta = (U_cnn / 2) @ U.T.  U arrives pre-transposed and lane-dense; the
    # bf16/int8 -> f32 cast is exact for +-1 codes, accumulation is f32 on MXU.
    ucnn_half = ucnn_ref[...] * 0.5                                    # (N, B)
    u_t = ut_ref[...].astype(jnp.float32)                              # (B, TM)
    theta = jax.lax.dot_general(
        ucnn_half, u_t,
        dimension_numbers=(((1,), (0,)), ((), ())),
        preferred_element_type=jnp.float32)                            # (N, TM)
    theta = jnp.clip(theta, -100.0, 50.0)

    # S in {0, 1}:  log(1+exp(t)) - s*t  ==  log(1+exp(where(s, -t, t))).
    # Same transcendental count, drops the multiply+subtract, keeps exp's
    # argument <= 0 whenever s == 1.
    s_is_one = s_ref[...] != 0
    z = jnp.where(s_is_one, -theta, theta)
    pair = jnp.log(1.0 + jnp.exp(z))                                   # (N, TM)

    if needs_mask:
        # Only the tail tile (and fully-masked duplicate tiles produced by the
        # clamped index map) pay for the iota/cmp/select; clean steps skip it.
        start = (p * tiles_per_slice + j) * tile_m

        @pl.when(start + tile_m <= m)
        def _():
            _accumulate(acc_ref, pair, tile_m)

        @pl.when(start + tile_m > m)
        def _():
            col = jax.lax.broadcasted_iota(jnp.int32, (n, tile_m), 1)
            masked = jnp.where(col + start < m, pair, 0.0)
            _accumulate(acc_ref, masked, tile_m)
    else:
        _accumulate(acc_ref, pair, tile_m)

    @pl.when(j == pl.num_programs(1) - 1)
    def _():
        # One cross-sublane reduce per slice; scalar combine happens in the wrapper.
        pair_out_ref[...] = jnp.sum(
            acc_ref[...], axis=0, keepdims=True).reshape(1, 1, 128)


def _tpu_generation_params():
    """Per-generation VMEM budget / tile cap / slice count."""
    kind = ""
    try:
        kind = jax.devices()[0].device_kind.lower()
    except Exception:  # pragma: no cover - defensive, e.g. AOT on CPU
        pass
    if "v7" in kind:
        # 64 MiB VMEM per TC, 2 TCs: shard the M reduction, leave compiler headroom.
        return dict(vmem_budget=36 << 20, tile_cap=8192,
                    vmem_limit_cap=56 << 20, num_slices=2)
    # v5e / v6e: 128 MiB VMEM, single TC -> one slice, big tiles.
    return dict(vmem_budget=96 << 20, tile_cap=16384,
                vmem_limit_cap=112 << 20, num_slices=1)


def _choose_tile_m(n, m, b, u_itemsize, s_itemsize, vmem_budget, cap):
    """Largest multiple-of-128 M tile whose streams + f32 intermediates fit the budget."""
    if m <= 128:
        return m
    # Per M column: double-buffered U/S tiles + ~4 (N, tile_m) f32 in-kernel temporaries.
    per_col = 2 * (b * u_itemsize + n * s_itemsize) + 4 * n * 4
    fixed = 2 * n * b * 4 + n * 128 * 4 + (2 << 20)   # resident U_cnn, acc, headroom
    avail = max(vmem_budget - fixed, per_col * 128)
    t = (avail // per_col) // 128 * 128
    return int(max(128, min(t, cap, (m // 128) * 128)))


def dpsh_loss(u_cnn, u, s, eta, *, tile_m=None, num_slices=None):
    """Pallas TPU implementation of DPSHLoss.forward.

    u_cnn : (N, B) network outputs for the batch (any float dtype).
    u     : (M, B) database codes; pass bf16/int8 to halve/quarter HBM traffic
            (bit-exact for +-1 hash codes).
    s     : (N, M) 0/1 similarity matrix; pass int8 to cut HBM traffic 4x.
    """
    n, b = u_cnn.shape
    m, b2 = u.shape
    assert b == b2 and s.shape == (n, m)

    params = _tpu_generation_params()
    if num_slices is None:
        num_slices = params["num_slices"]

    u_cnn = u_cnn.astype(jnp.float32)
    # Pre-transpose U to (B, M): lane-dense tiles + large contiguous DMA bursts.
    # TODO(synk): in a real training loop store the database as (B, M) to skip this transpose.
    u_t = jnp.transpose(u)
    u_itemsize = jnp.dtype(u.dtype).itemsize
    s_itemsize = jnp.dtype(s.dtype).itemsize

    if tile_m is None:
        tile_m = _choose_tile_m(n, m, b, u_itemsize, s_itemsize,
                                params["vmem_budget"], params["tile_cap"])
    total_tiles = -(-m // tile_m)
    num_slices = max(1, min(int(num_slices), total_tiles))
    tiles_per_slice = -(-total_tiles // num_slices)
    last_tile = total_tiles - 1
    needs_mask = (m % tile_m != 0) or (num_slices * tiles_per_slice != total_tiles)

    def u_map(p_idx, j_idx):
        return (0, jnp.minimum(p_idx * tiles_per_slice + j_idx, last_tile))

    def s_map(p_idx, j_idx):
        return (0, jnp.minimum(p_idx * tiles_per_slice + j_idx, last_tile))

    def out_map(p_idx, j_idx):
        return (p_idx, 0, 0)

    # VMEM accounting: resident U_cnn + double-buffered U/S tiles + (N, tile_m)
    # f32 intermediates + accumulator + outputs, with ~1.5x headroom, capped per
    # generation so Mosaic keeps room for internal scratch.
    need = (2 * n * b * 4
            + 2 * tile_m * b * u_itemsize
            + 2 * n * tile_m * s_itemsize
            + 4 * n * tile_m * 4
            + n * 128 * 4
            + num_slices * 128 * 4)
    vmem_limit = int(min(params["vmem_limit_cap"],
                         max(32 << 20, need + need // 2)))

    cost = pl.CostEstimate(
        flops=2 * n * m * b,
        transcendentals=2 * n * m,
        bytes_accessed=(n * b * 4 + m * b * u_itemsize + n * m * s_itemsize
                        + num_slices * 128 * 4),
    )

    kernel = functools.partial(
        _dpsh_kernel, n=n, m=m, tile_m=tile_m,
        tiles_per_slice=tiles_per_slice, needs_mask=needs_mask)

    pair_out = pl.pallas_call(
        kernel,
        out_shape=jax.ShapeDtypeStruct((num_slices, 1, 128), jnp.float32),
        grid_spec=pltpu.PrefetchScalarGridSpec(
            num_scalar_prefetch=0,
            grid=(num_slices, tiles_per_slice),
            in_specs=[
                pl.BlockSpec((n, b), lambda p_idx, j_idx: (0, 0)),   # U_cnn (resident)
                pl.BlockSpec((b, tile_m), u_map),                    # U.T tile (stored dtype)
                pl.BlockSpec((n, tile_m), s_map),                    # S tile (stored dtype)
            ],
            out_specs=pl.BlockSpec((1, 1, 128), out_map),            # per-slice pair partials
            scratch_shapes=[pltpu.VMEM((n, 128), jnp.float32)],      # lane-wide accumulator
        ),
        compiler_params=pltpu.CompilerParams(
            dimension_semantics=("parallel", "arbitrary"),           # shard slices on v7x
            vmem_limit_bytes=vmem_limit,
        ),
        cost_estimate=cost,
    )(u_cnn, u_t, s)

    pair_loss = jnp.sum(pair_out) / jnp.float32(n * m)
    # Regularization is O(N*B): a fused XLA op on the batch array, kept out of
    # the kernel epilogue. sign(0) = 0 matches torch.
    diff = u_cnn - jnp.sign(u_cnn)
    regular_term = jnp.sum(diff * diff) / jnp.float32(n * b)
    return pair_loss + jnp.float32(eta) * regular_term


def dpsh_loss_ref(u_cnn, u, s, eta):
    """Pure-JAX reference matching the PyTorch module."""
    theta = (u_cnn @ u.T) / 2.0
    theta = jnp.clip(theta, -100.0, 50.0)
    pair_loss = jnp.mean(jnp.log(1.0 + jnp.exp(theta)) - s * theta)
    regular_term = jnp.mean((u_cnn - jnp.sign(u_cnn)) ** 2)
    return pair_loss + eta * regular_term


if __name__ == "__main__":
    key = jax.random.PRNGKey(0)
    k1, k2, k3 = jax.random.split(key, 3)

    # batch, database size (not a tile multiple -> exercises the tail mask), hash bits
    N, M, B = 8, 320, 32
    eta = 0.1

    u_cnn = jax.random.normal(k1, (N, B), dtype=jnp.float32) * 2.0
    # Database hash codes are exactly +-1 -> bf16 storage is bit-exact and halves HBM traffic.
    u_bf16 = jnp.sign(jax.random.normal(k2, (M, B), dtype=jnp.float32)).astype(jnp.bfloat16)
    s_bool = jax.random.uniform(k3, (N, M)) > 0.5
    s_i8 = s_bool.astype(jnp.int8)           # S is {0,1} -> stream as int8 (4x less HBM)
    s_f32 = s_bool.astype(jnp.float32)

    loss = jax.block_until_ready(dpsh_loss(u_cnn, u_bf16, s_i8, eta))
    ref = jax.block_until_ready(
        dpsh_loss_ref(u_cnn, u_bf16.astype(jnp.float32), s_f32, eta))

    assert jnp.allclose(loss, ref, rtol=1e-4, atol=1e-4), (loss, ref)
    print("KERNEL_OK")
</pallas_src>

<mosaic_0001>
module attributes {stable_mosaic.version = 11 : i64} {
  func.func @_dpsh_kernel(%arg0: i32, %arg1: i32, %arg2: memref<8x32xf32, #tpu.memory_space<vmem>>, %arg3: memref<32x256xbf16, #tpu.memory_space<vmem>>, %arg4: memref<8x256xi8, #tpu.memory_space<vmem>>, %arg5: memref<1x1x128xf32, #tpu.memory_space<vmem>>, %arg6: memref<8x128xf32, #tpu.memory_space<vmem>>) attributes {dimension_semantics = [#tpu.dimension_semantics<parallel>, #tpu.dimension_semantics<arbitrary>], iteration_bounds = array<i64: 1, 2>, scalar_prefetch = 0 : i64, scratch_operands = 1 : i64, tpu.core_type = #tpu.core_type<tc>, window_params = [{pipeline_mode = #tpu.pipeline_mode<synchronous>, transform_indices = @transform_0, window_bounds = array<i64: 8, 32>}, {transform_indices = @transform_1, window_bounds = array<i64: 32, 256>}, {transform_indices = @transform_2, window_bounds = array<i64: 8, 256>}, {transform_indices = @transform_3, window_bounds = array<i64: 1, 1, 128>}]} {
    %c0_i32 = arith.constant 0 : i32
    %0 = arith.cmpi eq, %arg1, %c0_i32 : i32
    %1 = arith.extui %0 : i1 to i32
    %c0_i32_0 = arith.constant 0 : i32
    %2 = arith.cmpi ne, %1, %c0_i32_0 : i32
    scf.if %2 {
      %cst_17 = arith.constant 0.000000e+00 : f32
      %37 = vector.broadcast %cst_17 : f32 to vector<8x128xf32>
      %c0_18 = arith.constant 0 : index
      %c0_19 = arith.constant 0 : index
      %38 = vector.load %arg6[%c0_18, %c0_19] : memref<8x128xf32, #tpu.memory_space<vmem>>, vector<8x128xf32>
      tpu.vector_store %arg6[%c0_18, %c0_19], %37 {strides = array<i32>} : memref<8x128xf32, #tpu.memory_space<vmem>>, vector<8x128xf32>,
    } else {
    }
    %c0 = arith.constant 0 : index
    %c0_1 = arith.constant 0 : index
    %3 = vector.load %arg2[%c0, %c0_1] : memref<8x32xf32, #tpu.memory_space<vmem>>, vector<8x32xf32>
    %cst = arith.constant 5.000000e-01 : f32
    %4 = vector.broadcast %cst : f32 to vector<8x32xf32>
    %5 = arith.mulf %3, %4 : vector<8x32xf32>
    %c0_2 = arith.constant 0 : index
    %c0_3 = arith.constant 0 : index
    %6 = vector.load %arg3[%c0_2, %c0_3] : memref<32x256xbf16, #tpu.memory_space<vmem>>, vector<32x256xbf16>
    %7 = arith.extf %6 : vector<32x256xbf16> to vector<32x256xf32>
    %cst_4 = arith.constant dense<0.000000e+00> : vector<8x256xf32>
    %8 = tpu.matmul %5, %7, %cst_4 {dimension_numbers = #tpu.dot_dimension_numbers<[1], [0], [0], [1], [0, 0, 1, 1], [], []>} : vector<8x32xf32>, vector<32x256xf32>, vector<8x256xf32> -> vector<8x256xf32>
    %cst_5 = arith.constant -1.000000e+02 : f32
    %cst_6 = arith.constant 5.000000e+01 : f32
    %9 = vector.broadcast %cst_5 : f32 to vector<8x256xf32>
    %10 = arith.maximumf %9, %8 : vector<8x256xf32>
    %11 = vector.broadcast %cst_6 : f32 to vector<8x256xf32>
    %12 = arith.minimumf %11, %10 : vector<8x256xf32>
    %c0_7 = arith.constant 0 : index
    %c0_8 = arith.constant 0 : index
    %13 = vector.load %arg4[%c0_7, %c0_8] : memref<8x256xi8, #tpu.memory_space<vmem>>, vector<8x256xi8>
    %c0_i8 = arith.constant 0 : i8
    %14 = vector.broadcast %c0_i8 : i8 to vector<8x256xi8>
    %15 = arith.cmpi ne, %13, %14 : vector<8x256xi8>
    %cst_9 = arith.constant 0.000000e+00 : f32
    %16 = vector.broadcast %cst_9 : f32 to vector<8x256xf32>
    %17 = arith.subf %16, %12 : vector<8x256xf32>
    %18 = arith.select %15, %17, %12 : vector<8x256xi1>, vector<8x256xf32>
    %19 = math.exp %18 : vector<8x256xf32>
    %cst_10 = arith.constant 1.000000e+00 : f32
    %20 = vector.broadcast %cst_10 : f32 to vector<8x256xf32>
    %21 = arith.addf %20, %19 : vector<8x256xf32>
    %22 = math.log %21 : vector<8x256xf32>
    %c2_i32 = arith.constant 2 : i32
    %23 = arith.muli %arg0, %c2_i32 : i32
    %24 = arith.addi %23, %arg1 : i32
    %c256_i32 = arith.constant 256 : i32
    %25 = arith.muli %24, %c256_i32 : i32
    %c256_i32_11 = arith.constant 256 : i32
    %26 = arith.addi %25, %c256_i32_11 : i32
    %c320_i32 = arith.constant 320 : i32
    %27 = arith.cmpi sle, %26, %c320_i32 : i32
    %28 = arith.extui %27 : i1 to i32
    %c0_i32_12 = arith.constant 0 : i32
    %29 = arith.cmpi ne, %28, %c0_i32_12 : i32
    scf.if %29 {
      %37 = vector.extract_strided_slice %22 {offsets = [0, 0], sizes = [8, 128], strides = [1, 1]} : vector<8x256xf32> to vector<8x128xf32>
      %38 = vector.extract_strided_slice %22 {offsets = [0, 128], sizes = [8, 128], strides = [1, 1]} : vector<8x256xf32> to vector<8x128xf32>
      %39 = arith.addf %37, %38 : vector<8x128xf32>
      %c0_17 = arith.constant 0 : index
      %c0_18 = arith.constant 0 : index
      %40 = vector.load %arg6[%c0_17, %c0_18] : memref<8x128xf32, #tpu.memory_space<vmem>>, vector<8x128xf32>
      %41 = arith.addf %40, %39 : vector<8x128xf32>
      %c0_19 = arith.constant 0 : index
      %c0_20 = arith.constant 0 : index
      %42 = vector.load %arg6[%c0_19, %c0_20] : memref<8x128xf32, #tpu.memory_space<vmem>>, vector<8x128xf32>
      tpu.vector_store %arg6[%c0_19, %c0_20], %41 {strides = array<i32>} : memref<8x128xf32, #tpu.memory_space<vmem>>, vector<8x128xf32>,
    } else {
    }
    %c256_i32_13 = arith.constant 256 : i32
    %30 = arith.addi %25, %c256_i32_13 : i32
    %c320_i32_14 = arith.constant 320 : i32
    %31 = arith.cmpi sgt, %30, %c320_i32_14 : i32
    %32 = arith.extui %31 : i1 to i32
    %c0_i32_15 = arith.constant 0 : i32
    %33 = arith.cmpi ne, %32, %c0_i32_15 : i32
    scf.if %33 {
      %37 = tpu.iota {dimensions = array<i32: 1>} : vector<8x256xi32>
      %38 = vector.broadcast %25 : i32 to vector<8x256xi32>
      %39 = arith.addi %37, %38 : vector<8x256xi32>
      %c320_i32_17 = arith.constant 320 : i32
      %40 = vector.broadcast %c320_i32_17 : i32 to vector<8x256xi32>
      %41 = arith.cmpi slt, %39, %40 : vector<8x256xi32>
      %cst_18 = arith.constant 0.000000e+00 : f32
      %42 = vector.broadcast %cst_18 : f32 to vector<8x256xf32>
      %43 = arith.select %41, %22, %42 : vector<8x256xi1>, vector<8x256xf32>
      %44 = vector.extract_strided_slice %43 {offsets = [0, 0], sizes = [8, 128], strides = [1, 1]} : vector<8x256xf32> to vector<8x128xf32>
      %45 = vector.extract_strided_slice %43 {offsets = [0, 128], sizes = [8, 128], strides = [1, 1]} : vector<8x256xf32> to vector<8x128xf32>
      %46 = arith.addf %44, %45 : vector<8x128xf32>
      %c0_19 = arith.constant 0 : index
      %c0_20 = arith.constant 0 : index
      %47 = vector.load %arg6[%c0_19, %c0_20] : memref<8x128xf32, #tpu.memory_space<vmem>>, vector<8x128xf32>
      %48 = arith.addf %47, %46 : vector<8x128xf32>
      %c0_21 = arith.constant 0 : index
      %c0_22 = arith.constant 0 : index
      %49 = vector.load %arg6[%c0_21, %c0_22] : memref<8x128xf32, #tpu.memory_space<vmem>>, vector<8x128xf32>
      tpu.vector_store %arg6[%c0_21, %c0_22], %48 {strides = array<i32>} : memref<8x128xf32, #tpu.memory_space<vmem>>, vector<8x128xf32>,
    } else {
    }
    %c1_i32 = arith.constant 1 : i32
    %34 = arith.cmpi eq, %arg1, %c1_i32 : i32
    %35 = arith.extui %34 : i1 to i32
    %c0_i32_16 = arith.constant 0 : i32
    %36 = arith.cmpi ne, %35, %c0_i32_16 : i32
    scf.if %36 {
      %c0_17 = arith.constant 0 : index
      %c0_18 = arith.constant 0 : index
      %37 = vector.load %arg6[%c0_17, %c0_18] : memref<8x128xf32, #tpu.memory_space<vmem>>, vector<8x128xf32>
      %cst_19 = arith.constant dense<0.000000e+00> : vector<128xf32>
      %38 = vector.multi_reduction <add>, %37, %cst_19 [0] : vector<8x128xf32> to vector<128xf32>
      %39 = vector.shape_cast %38 : vector<128xf32> to vector<1x128xf32>
      %40 = vector.shape_cast %39 : vector<1x128xf32> to vector<1x1x128xf32>
      %c0_20 = arith.constant 0 : index
      %c0_21 = arith.constant 0 : index
      %c0_22 = arith.constant 0 : index
      %41 = vector.load %arg5[%c0_20, %c0_21, %c0_22] : memref<1x1x128xf32, #tpu.memory_space<vmem>>, vector<1x1x128xf32>
      tpu.vector_store %arg5[%c0_20, %c0_21, %c0_22], %40 {strides = array<i32>} : memref<1x1x128xf32, #tpu.memory_space<vmem>>, vector<1x1x128xf32>,
    } else {
    }
    return
  }
  func.func @transform_0(%arg0: i32, %arg1: i32) -> (i32, i32) {
    %c0_i32 = arith.constant 0 : i32
    %c0_i32_0 = arith.constant 0 : i32
    %c0_i32_1 = arith.constant 0 : i32
    return %c0_i32, %c0_i32_0 : i32, i32
  }
  func.func @transform_1(%arg0: i32, %arg1: i32) -> (i32, i32) {
    %c2_i32 = arith.constant 2 : i32
    %0 = arith.muli %arg0, %c2_i32 : i32
    %1 = arith.addi %0, %arg1 : i32
    %c1_i32 = arith.constant 1 : i32
    %2 = arith.minsi %1, %c1_i32 : i32
    %c0_i32 = arith.constant 0 : i32
    %c0_i32_0 = arith.constant 0 : i32
    return %c0_i32, %2 : i32, i32
  }
  func.func @transform_2(%arg0: i32, %arg1: i32) -> (i32, i32) {
    %c2_i32 = arith.constant 2 : i32
    %0 = arith.muli %arg0, %c2_i32 : i32
    %1 = arith.addi %0, %arg1 : i32
    %c1_i32 = arith.constant 1 : i32
    %2 = arith.minsi %1, %c1_i32 : i32
    %c0_i32 = arith.constant 0 : i32
    %c0_i32_0 = arith.constant 0 : i32
    return %c0_i32, %2 : i32, i32
  }
  func.func @transform_3(%arg0: i32, %arg1: i32) -> (i32, i32, i32) {
    %c0_i32 = arith.constant 0 : i32
    %c0_i32_0 = arith.constant 0 : i32
    %c0_i32_1 = arith.constant 0 : i32
    return %arg0, %c0_i32, %c0_i32_0 : i32, i32, i32
  }
}

</mosaic_0001>

<llo_original>
// kernel: tpu_custom_call.1
$region0: #{tpu_custom_call.1}
  #allocation0 [shape = 'u32[]', space=smem, size = 0x4, offset = 0x4, fixed_abs, tag = 'smem constant byte address 0x4 - core index']
  #allocation1 [shape = 'u32[72,128]{1,0:T(1,128)}', space=vmem, size = 0x9000, scoped, tag = 'internal scratch']
  #allocation2 [shape = 'f32[8,128]{1,0:T(8,128)}', space=vmem, size = 0x1000, scoped, tag = 'scratch operand']
  %s0 = inlined_call_operand.hbm [shape: f32[8,32], index: 0, kind: input, shape index: {}]
  %s1 = inlined_call_operand.hbm [shape: bf16[32,320], index: 1, kind: input, shape index: {}]
  %s2 = inlined_call_operand.hbm [shape: s8[8,320], index: 2, kind: input, shape index: {}]
  %s3 = inlined_call_operand.hbm [shape: f32[1,1,128], index: 3, kind: output, shape index: {}]
  %s4 = sld [smem:[#allocation0]]
  $region73: #{tpu_custom_call.1} parent=0
    _
  %s6 = ssub.s32 1, %s4
  %s7 = scalar_select 0, %s6, %s4
  $region1: #{tpu_custom_call.1} parent=0
    #allocation3 [shape = 'u8[4096]{0}', space=vmem, size = 0x1000, scoped, tag = 'input window, operand 0, single buffered']
    #allocation4 [shape = 's32[2]{0}', space=sflag, size = 0x8, scoped, tag = 'scoped memory for tpu_custom_call.1']
    #allocation5 [shape = 's32[2]{0}', space=sflag, size = 0x8, scoped, tag = 'scoped memory for tpu_custom_call.1']
    #allocation6 [shape = 'u8[32768]{0}', space=vmem, size = 0x8000, scoped, tag = 'input window, operand 1']
    #allocation7 [shape = 's32[2]{0}', space=sflag, size = 0x8, scoped, tag = 'scoped memory for tpu_custom_call.1']
    #allocation8 [shape = 'u8[4096]{0}', space=vmem, size = 0x1000, scoped, tag = 'input window, operand 2']
    #allocation9 [shape = 'u8[512]{0}', space=vmem, size = 0x400, scoped, tag = 'output window, operand 0, single buffered']
    %8 = vsyncpa [#allocation4], 0
    %9 = vsyncpa [#allocation7], 0
    %s10 = scalar_lea.sflag [#allocation7], 1
    %11 = vsyncpa %s10, 0
    %12 = vsyncpa [#allocation5], 0
    loop: start=0, step=1, limit=4
    $region2: #{tpu_custom_call.1} parent=1 // loop_pre_header
      _
    $region3: #{tpu_custom_call.1} parent=1 // loop_header
      %s14 = sphi 0, %s18
      %p15 = scmp.ge.s32.totalorder %s14, 4
      %s21 = sphi 0, %s33
      %s22 = sphi 0, %s29
      %s23 = sphi 0, %s21
      %s24 = sphi 0, %s22
      %s25 = sphi 0, %s23
      %s26 = sphi 0, %s24
      %s34 = sphi 0, %s34
      %s36 = sphi 0, %s34
      %s37 = sphi 0, %s36
      %s51 = sphi 0, %s37
      %s65 = sphi 0, %s67
      %s68 = sphi 0, %s65
      %s69 = sphi 0, %s68
      %s85 = sphi 0, %s69
      %s99 = sphi 0, %s101
      %s102 = sphi 0, %s99
      %s103 = sphi 0, %s102
      %s119 = sphi 0, %s103
      %s125 = sphi 0, %s127
      %s128 = sphi 0, %s125
      %s129 = sphi 0, %s128
      %s145 = sphi 0, %s129
    $region4: #{tpu_custom_call.1} parent=1 // loop_header_branch
      %17 = sbr.rel (%p15) target = $region8
    $region5: #{tpu_custom_call.1} parent=1 // loop_body
      %s19 = ssub.s32 %s14, 1
      %s20 = ssub.s32 %s14, 2
      %s27 = sadd.s32 1, %s22
      %p28 = scmp.ge.s32.totalorder %s27, 2
      %s29 = scalar_select %p28, 0, %s27
      %s30 = sadd.s32 1, %s21
      %s31 = scalar_select %p28, %s30, %s21
      %p32 = scmp.ge.s32.totalorder %s31, 1
      %s33 = scalar_select %p32, 0, %s31
      %s35 = sadd.s32 %s34, 1
      %p38 = scmp.eq.s32.totalorder %s14, 1
      %p39 = scmp.ne.s32.totalorder %s34, %s36
      %p40 = scmp.eq.s32.totalorder %s14, 0
      %p41 = por %p39, %p40
      %p42 = scmp.ne.s32.totalorder %s34, %s36
      %p43 = scmp.eq.s32.totalorder %s19, 1
      %p44 = por %p42, %p43
      %p45 = scmp.ne.s32.totalorder %s36, %s37
      %p46 = scmp.eq.s32.totalorder %s19, 0
      %p47 = por %p45, %p46
      %p48 = scmp.ne.s32.totalorder %s36, %s37
      %p49 = scmp.eq.s32.totalorder %s20, 1
      %p50 = por %p48, %p49
      %p52 = scmp.ne.s32.totalorder %s37, %s51
      %p53 = scmp.eq.s32.totalorder %s20, 0
      %p54 = por %p52, %p53
      %s55 = smul.u32 %s21, 2
      %s56 = sadd.s32 %s55, %s22
      %p57 = scmp.lt.s32.totalorder %s56, 1
      %s58 = scalar_select %p57, %s56, 1
      %s59 = smul.u32 %s33, 2
      %s60 = sadd.s32 %s59, %s29
      %p61 = scmp.lt.s32.totalorder %s60, 1
      %s62 = scalar_select %p61, %s60, 1
      %s63 = ssub.s32 %s58, %s62
      %p64 = scmp.eq.s32.totalorder %s63, 0
      %s66 = sadd.s32 %s65, 1
      %s67 = scalar_select %p64, %s65, %s66
      %p70 = pneg %p64
      %p71 = scmp.eq.s32.totalorder %s14, 1
      %p72 = por %p70, %p71
      %p73 = scmp.ne.s32.totalorder %s65, %s68
      %p74 = scmp.eq.s32.totalorder %s14, 0
      %p75 = por %p73, %p74
      %p76 = scmp.ne.s32.totalorder %s65, %s68
      %p77 = scmp.eq.s32.totalorder %s19, 1
      %p78 = por %p76, %p77
      %p79 = scmp.ne.s32.totalorder %s68, %s69
      %p80 = scmp.eq.s32.totalorder %s19, 0
      %p81 = por %p79, %p80
      %p82 = scmp.ne.s32.totalorder %s68, %s69
      %p83 = scmp.eq.s32.totalorder %s20, 1
      %p84 = por %p82, %p83
      %p86 = scmp.ne.s32.totalorder %s69, %s85
      %p87 = scmp.eq.s32.totalorder %s20, 0
      %p88 = por %p86, %p87
      %s89 = smul.u32 %s21, 2
      %s90 = sadd.s32 %s89, %s22
      %p91 = scmp.lt.s32.totalorder %s90, 1
      %s92 = scalar_select %p91, %s90, 1
      %s93 = smul.u32 %s33, 2
      %s94 = sadd.s32 %s93, %s29
      %p95 = scmp.lt.s32.totalorder %s94, 1
      %s96 = scalar_select %p95, %s94, 1
      %s97 = ssub.s32 %s92, %s96
      %p98 = scmp.eq.s32.totalorder %s97, 0
      %s100 = sadd.s32 %s99, 1
      %s101 = scalar_select %p98, %s99, %s100
      %p104 = pneg %p98
      %p105 = scmp.eq.s32.totalorder %s14, 1
      %p106 = por %p104, %p105
      %p107 = scmp.ne.s32.totalorder %s99, %s102
      %p108 = scmp.eq.s32.totalorder %s14, 0
      %p109 = por %p107, %p108
      %p110 = scmp.ne.s32.totalorder %s99, %s102
      %p111 = scmp.eq.s32.totalorder %s19, 1
      %p112 = por %p110, %p111
      %p113 = scmp.ne.s32.totalorder %s102, %s103
      %p114 = scmp.eq.s32.totalorder %s19, 0
      %p115 = por %p113, %p114
      %p116 = scmp.ne.s32.totalorder %s102, %s103
      %p117 = scmp.eq.s32.totalorder %s20, 1
      %p118 = por %p116, %p117
      %p120 = scmp.ne.s32.totalorder %s103, %s119
      %p121 = scmp.eq.s32.totalorder %s20, 0
      %p122 = por %p120, %p121
      %s123 = ssub.s32 %s21, %s33
      %p124 = scmp.eq.s32.totalorder %s123, 0
      %s126 = sadd.s32 %s125, 1
      %s127 = scalar_select %p124, %s125, %s126
      %p130 = pneg %p124
      %p131 = scmp.eq.s32.totalorder %s14, 1
      %p132 = por %p130, %p131
      %p133 = scmp.ne.s32.totalorder %s125, %s128
      %p134 = scmp.eq.s32.totalorder %s14, 0
      %p135 = por %p133, %p134
      %p136 = scmp.ne.s32.totalorder %s125, %s128
      %p137 = scmp.eq.s32.totalorder %s19, 1
      %p138 = por %p136, %p137
      %p139 = scmp.ne.s32.totalorder %s128, %s129
      %p140 = scmp.eq.s32.totalorder %s19, 0
      %p141 = por %p139, %p140
      %p142 = scmp.ne.s32.totalorder %s128, %s129
      %p143 = scmp.eq.s32.totalorder %s20, 1
      %p144 = por %p142, %p143
      %p146 = scmp.ne.s32.totalorder %s129, %s145
      %p147 = scmp.eq.s32.totalorder %s20, 0
      %p148 = por %p146, %p147
      %p149 = scmp.le.s32.totalorder 1, %s14
      %p150 = scmp.lt.s32.totalorder %s14, 3
      %p151 = pnand %p149, %p150
      %p152 = pneg %p151
      // Predicated region
      $region9: #{tpu_custom_call.1} parent=5 // pred_check
        _
      $region10: #{tpu_custom_call.1} parent=5 // pred_check_branch
        %154 = sbr.rel (%p151) target = $region12
      $region11: #{tpu_custom_call.1} parent=5 // pred_region
        %s155 = ssub.s32 %s14, 1
        // Predicated region
        $region13: #{tpu_custom_call.1} parent=11 // pred_check
          %p156 = pneg %p47
        $region14: #{tpu_custom_call.1} parent=11 // pred_check_branch
          %158 = sbr.rel (%p156) target = $region16
        $region15: #{tpu_custom_call.1} parent=11 // pred_region
          %160 = vsyncadd [#allocation4], 0
          %s162 = sshll.u32 %s0, 4
          %s163 = int_to_ptr.hbm [resolvable:$true] %s162
          %s164 = sshll.u32 [#allocation3], 4
          %s165 = int_to_ptr.vmem [resolvable:$true] %s164
          %167 = dma.hbm_to_vmem [thread:$0]  %s163, 128, %s165, [#allocation4]
        $region16: #{tpu_custom_call.1} parent=11 // pred_fallthru
          _
      $region12: #{tpu_custom_call.1} parent=5 // pred_fallthru
        _
      %p168 = scmp.lt.s32.totalorder %s14, 2
      // Predicated region
      $region17: #{tpu_custom_call.1} parent=5 // pred_check
        %p169 = pneg %p168
      $region18: #{tpu_custom_call.1} parent=5 // pred_check_branch
        %171 = sbr.rel (%p169) target = $region20
      $region19: #{tpu_custom_call.1} parent=5 // pred_region
        // Predicated region
        $region21: #{tpu_custom_call.1} parent=19 // pred_check
          %p172 = pneg %p75
        $region22: #{tpu_custom_call.1} parent=19 // pred_check_branch
          %174 = sbr.rel (%p172) target = $region24
        $region23: #{tpu_custom_call.1} parent=19 // pred_region
          %s175 = sand.u32 %s14, 1
          %s176 = scalar_lea.sflag [#allocation7], %s175
          %s177 = sand.u32 %s65, 1
          %s178 = smul.addr %s177, 32
          %s179 = scalar_lea.vmem [#allocation6], %s178
          %s180 = smul.u32 %s21, 2
          %s181 = sadd.s32 %s180, %s22
          %p182 = scmp.lt.s32.totalorder %s181, 1
          %s183 = scalar_select %p182, %s181, 1
          %s184 = smul.u32 2, %s183
          %s185 = ssub.s32 3, %s184
          %p186 = scmp.lt.s32.totalorder %s185, 2
          %s187 = scalar_select %p186, %s185, 2
          %s188 = smul.u32 16, %s187
          %s189 = ssub.s32 32, %s188
          %s190 = sshll.u32 %s189, 4
          %191 = vsyncadd %s176, %s190
          %p192 = scmp.ne.s32.totalorder 0, %s188
          %s193 = smul.addr %s184, 4
          %s194 = scalar_lea.hbm %s1, %s193
          %s195 = smul.u32 %s187, 4
          %s196 = smul.u32 %s195, 4
          %s197 = sshll.u32 %s194, 4
          %s198 = int_to_ptr.hbm [resolvable:$true] %s197
          %s199 = sshll.u32 %s179, 4
          %s200 = int_to_ptr.vmem [resolvable:$true] %s199
          %s201 = sshll.u32 %s196, 4
          %205 = dma.hbm_to_vmem [thread:$0]  (%p192), %s198, %s201, %s200, %s176, 192, 128, %s195
        $region24: #{tpu_custom_call.1} parent=19 // pred_fallthru
          _
        // Predicated region
        $region25: #{tpu_custom_call.1} parent=19 // pred_check
          %p206 = pneg %p109
        $region26: #{tpu_custom_call.1} parent=19 // pred_check_branch
          %208 = sbr.rel (%p206) target = $region28
        $region27: #{tpu_custom_call.1} parent=19 // pred_region
          %s209 = sand.u32 %s14, 1
          %s210 = scalar_lea.sflag [#allocation7], %s209
          %s211 = sand.u32 %s99, 1
          %s212 = smul.addr %s211, 4
          %s213 = scalar_lea.vmem [#allocation8], %s212
          %s214 = smul.u32 %s21, 2
          %s215 = sadd.s32 %s214, %s22
          %p216 = scmp.lt.s32.totalorder %s215, 1
          %s217 = scalar_select %p216, %s215, 1
          %s218 = smul.u32 2, %s217
          %s219 = ssub.s32 3, %s218
          %p220 = scmp.lt.s32.totalorder %s219, 2
          %s221 = scalar_select %p220, %s219, 2
          %s222 = smul.u32 2, %s221
          %s223 = ssub.s32 4, %s222
          %s224 = sshll.u32 %s223, 4
          %225 = vsyncadd %s210, %s224
          %p226 = scmp.ne.s32.totalorder 0, %s222
          %s227 = smul.addr %s218, 2
          %s228 = scalar_lea.hbm %s2, %s227
          %s229 = smul.u32 %s221, 2
          %s230 = sshll.u32 %s229, 4
          %s231 = sshll.u32 %s228, 4
          %s232 = int_to_ptr.hbm [resolvable:$true] %s231
          %s233 = sshll.u32 %s213, 4
          %s234 = int_to_ptr.vmem [resolvable:$true] %s233
          %236 = dma.hbm_to_vmem [thread:$0]  (%p226), %s232, %s230, %s234, %s210
        $region28: #{tpu_custom_call.1} parent=19 // pred_fallthru
          _
      $region20: #{tpu_custom_call.1} parent=5 // pred_fallthru
        _
      %p237 = scmp.le.s32.totalorder 1, %s14
      %p238 = scmp.lt.s32.totalorder %s14, 3
      %p239 = pnand %p237, %p238
      %p240 = pneg %p239
      // Predicated region
      $region29: #{tpu_custom_call.1} parent=5 // pred_check
        _
      $region30: #{tpu_custom_call.1} parent=5 // pred_check_branch
        %242 = sbr.rel (%p239) target = $region32
      $region31: #{tpu_custom_call.1} parent=5 // pred_region
        %s243 = ssub.s32 %s14, 1
        // Predicated region
        $region33: #{tpu_custom_call.1} parent=31 // pred_check
          %p244 = pneg %p47
        $region34: #{tpu_custom_call.1} parent=31 // pred_check_branch
          %246 = sbr.rel (%p244) target = $region36
        $region35: #{tpu_custom_call.1} parent=31 // pred_region
          %248 = dma.done [#allocation4], 128
        $region36: #{tpu_custom_call.1} parent=31 // pred_fallthru
          _
        %s249 = sand.u32 %s19, 1
        %s250 = scalar_lea.sflag [#allocation7], %s249
        %s251 = sand.u32 %s68, 1
        %s252 = smul.addr %s251, 32
        %s253 = scalar_lea.vmem [#allocation6], %s252
        // Predicated region
        $region37: #{tpu_custom_call.1} parent=31 // pred_check
          %p254 = pneg %p81
        $region38: #{tpu_custom_call.1} parent=31 // pred_check_branch
          %256 = sbr.rel (%p254) target = $region40
        $region39: #{tpu_custom_call.1} parent=31 // pred_region
          %258 = dma.done %s250, 512
        $region40: #{tpu_custom_call.1} parent=31 // pred_fallthru
          _
        %s259 = sand.u32 %s19, 1
        %s260 = scalar_lea.sflag [#allocation7], %s259
        %s261 = sand.u32 %s102, 1
        %s262 = smul.addr %s261, 4
        %s263 = scalar_lea.vmem [#allocation8], %s262
        // Predicated region
        $region41: #{tpu_custom_call.1} parent=31 // pred_check
          %p264 = pneg %p115
        $region42: #{tpu_custom_call.1} parent=31 // pred_check_branch
          %266 = sbr.rel (%p264) target = $region44
        $region43: #{tpu_custom_call.1} parent=31 // pred_region
          %268 = dma.done %s260, 64
        $region44: #{tpu_custom_call.1} parent=31 // pred_fallthru
          _
        %p269 = pneg %p47
        %p270 = pneg %p44
        %s271 = sand.u32 %s19, 1
        %s272 = scalar_lea.sflag [#allocation7], %s271
        %s273 = sand.u32 %s68, 1
        %s274 = smul.addr %s273, 32
        %s275 = scalar_lea.vmem [#allocation6], %s274
        %p276 = pneg %p81
        %p277 = pneg %p78
        %s278 = sand.u32 %s19, 1
        %s279 = scalar_lea.sflag [#allocation7], %s278
        %s280 = sand.u32 %s102, 1
        %s281 = smul.addr %s280, 4
        %s282 = scalar_lea.vmem [#allocation8], %s281
        %p283 = pneg %p115
        %p284 = pneg %p112
        %p285 = pneg %p141
        %p286 = pneg %p138
        %s287 = smul.u32 %s23, 2
        %s288 = sadd.s32 %s287, %s24
        %p289 = scmp.lt.s32.totalorder %s288, 1
        %s290 = scalar_select %p289, %s288, 1
        %s291 = smul.u32 2, %s290
        %s292 = ssub.s32 3, %s291
        %p293 = scmp.lt.s32.totalorder %s292, 2
        %s294 = scalar_select %p293, %s292, 2
        %s295 = smul.u32 16, %s294
        %s296 = smul.u32 %s23, 2
        %s297 = sadd.s32 %s296, %s24
        %p298 = scmp.lt.s32.totalorder %s297, 1
        %s299 = scalar_select %p298, %s297, 1
        %s300 = smul.u32 2, %s299
        %s301 = ssub.s32 3, %s300
        %p302 = scmp.lt.s32.totalorder %s301, 2
        %s303 = scalar_select %p302, %s301, 2
        %s304 = smul.u32 2, %s303
        %p307 = scmp.eq.s32.totalorder %s24, 0
        // Predicated region
        $region45: #{tpu_custom_call.1} parent=31 // pred_check
          %p308 = pneg %p307
        $region46: #{tpu_custom_call.1} parent=31 // pred_check_branch
          %310 = sbr.rel (%p308) target = $region48
        $region47: #{tpu_custom_call.1} parent=31 // pred_region
          %311 = vst [vmem:[#allocation2] sm:$0xff] 0.0
        $region48: #{tpu_custom_call.1} parent=31 // pred_fallthru
          _
        %v312 = vld [vmem:[#allocation3] sm:$0xff]
        %v313 = vmul.f32 %v312, 0.5
        %v314 = vld [vmem:[%s253] sm:$0xff]
        %v315 = vld [vmem:[%s253 + $0x8] sm:$0xff]
        %v316 = vld [vmem:[%s253 + $0x10] sm:$0xff]
        %v317 = vld [vmem:[%s253 + $0x18] sm:$0xff]
        %v318 = vunpack.c.l.bf16 %v314
        %v319 = vunpack.c.h.bf16 %v314
        %v320 = vunpack.c.l.bf16 %v315
        %v321 = vunpack.c.h.bf16 %v315
        %v322 = vunpack.c.l.bf16 %v316
        %v323 = vunpack.c.h.bf16 %v316
        %v324 = vunpack.c.l.bf16 %v317
        %v325 = vunpack.c.h.bf16 %v317
        %vm326 = vcmask 261120
        %v328 = vsel %vm326, %v313, 0
        %330 = vmatpush.msra.mxu0 0.0
        %331 = vmatpush.msra.mxu0 0.0
        %332 = vmatpush.msra.mxu0 0.0
        %333 = vmatpush.msra.mxu0 0.0
        %334 = vmatpush.msra.mxu0 0.0
        %335 = vmatpush.msra.mxu0 0.0
        %336 = vmatpush.msra.mxu0 0.0
        %337 = vmatpush.msra.mxu0 0.0
        %338 = vmatpush.msra.mxu0 0.0
        %339 = vmatpush.msra.mxu0 0.0
        %340 = vmatpush.msra.mxu0 0.0
        %341 = vmatpush.msra.mxu0 0.0
        %342 = vmatpush.msra.mxu0 %v324
        %343 = vmatpush.msra.mxu0 %v322
        %344 = vmatpush.msra.mxu0 %v320
        %345 = vmatpush.msra.mxu0 %v318
        %346 = vmatmul.f32.gmra.mxu0 %v328
        %v347 = vpop.f32.mrf.mxu0
        %v348 = vadd.f32 0.0, %v347
        %349 = vdwg.mxu0
        %350 = vmatpush.msra.mxu0 0.0
        %351 = vmatpush.msra.mxu0 0.0
        %352 = vmatpush.msra.mxu0 0.0
        %353 = vmatpush.msra.mxu0 0.0
        %354 = vmatpush.msra.mxu0 0.0
        %355 = vmatpush.msra.mxu0 0.0
        %356 = vmatpush.msra.mxu0 0.0
        %357 = vmatpush.msra.mxu0 0.0
        %358 = vmatpush.msra.mxu0 0.0
        %359 = vmatpush.msra.mxu0 0.0
        %360 = vmatpush.msra.mxu0 0.0
        %361 = vmatpush.msra.mxu0 0.0
        %362 = vmatpush.msra.mxu0 %v325
        %363 = vmatpush.msra.mxu0 %v323
        %364 = vmatpush.msra.mxu0 %v321
        %365 = vmatpush.msra.mxu0 %v319
        %366 = vmatmul.f32.gmra.mxu0 %v328
        %v367 = vpop.f32.mrf.mxu0
        %v368 = vadd.f32 0.0, %v367
        %369 = vdwg.mxu0
        %v370 = vmax.f32 %v348, -100.0
        %v371 = vmax.f32 %v368, -100.0
        %v372 = vmin.f32 %v370, 50.0
        %v373 = vmin.f32 %v371, 50.0
        %v374 = vld [vmem:[%s263] sm:$0xf]
        %vm375 = vnez %v374
        %v376 = vsub.f32 0.0, %v372
        %v377 = vsub.f32 0.0, %v373
        %v378 = vsel %vm375, 16843009, 0
        %v379 = vunpack.c.0.s8 %v378
        %v380 = vunpack.c.1.s8 %v378
        %vm381 = vcmp.ne.s32.totalorder %v379, 0
        %vm382 = vcmp.ne.s32.totalorder %v380, 0
        %v383 = vsel %vm381, %v376, %v372
        %v384 = vsel %vm382, %v377, %v373
        %v385 = vmul.f32 %v383, 1.442695
        %v386 = vpow.pop %v385
        %v387 = vmul.f32 %v384, 1.442695
        %v388 = vpow.pop %v387
        %v389 = vadd.f32 %v386, 1.0
        %v390 = vadd.f32 %v388, 1.0
        %v391 = vlog2.pop %v389
        %v392 = vmul.f32 %v391, 0.6931472
        %v393 = vlog2.pop %v390
        %v394 = vmul.f32 %v393, 0.6931472
        %s395 = smul.u32 %s23, 2
        %s396 = sadd.s32 %s395, %s24
        %s397 = smul.u32 %s396, 256
        %s398 = sadd.s32 %s397, 256
        %p399 = scmp.le.s32.totalorder %s398, 320
        // Predicated region
        $region49: #{tpu_custom_call.1} parent=31 // pred_check
          %p400 = pneg %p399
        $region50: #{tpu_custom_call.1} parent=31 // pred_check_branch
          %402 = sbr.rel (%p400) target = $region52
        $region51: #{tpu_custom_call.1} parent=31 // pred_region
          %v403 = vadd.f32 %v392, %v394
          %v404 = vld [vmem:[#allocation2] sm:$0xff]
          %v405 = vadd.f32 %v404, %v403
          %406 = vst [vmem:[#allocation2] sm:$0xff] %v405
        $region52: #{tpu_custom_call.1} parent=31 // pred_fallthru
          _
        %p407 = scmp.gt.s32.totalorder %s398, 320
        // Predicated region
        $region53: #{tpu_custom_call.1} parent=31 // pred_check
          %p408 = pneg %p407
        $region54: #{tpu_custom_call.1} parent=31 // pred_check_branch
          %410 = sbr.rel (%p408) target = $region56
        $region55: #{tpu_custom_call.1} parent=31 // pred_region
          %v411 = vlaneseq
          %v412 = vand.u32 %v411, 127
          %v413 = vadd.s32 %v412, 128
          %v414 = vstv %s397
          %v415 = vadd.s32 %v412, %v414
          %v416 = vadd.s32 %v413, %v414
          %vm417 = vcmp.lt.s32.totalorder %v415, 320
          %vm418 = vcmp.lt.s32.totalorder %v416, 320
          %v419 = vsel %vm417, %v392, 0.0
          %v420 = vsel %vm418, %v394, 0.0
          %v421 = vadd.f32 %v419, %v420
          %v422 = vld [vmem:[#allocation2] sm:$0xff]
          %v423 = vadd.f32 %v422, %v421
          %424 = vst [vmem:[#allocation2] sm:$0xff] %v423
        $region56: #{tpu_custom_call.1} parent=31 // pred_fallthru
          _
        %p425 = scmp.eq.s32.totalorder %s24, 1
        // Predicated region
        $region57: #{tpu_custom_call.1} parent=31 // pred_check
          %p426 = pneg %p425
        $region58: #{tpu_custom_call.1} parent=31 // pred_check_branch
          %428 = sbr.rel (%p426) target = $region60
        $region59: #{tpu_custom_call.1} parent=31 // pred_region
          %v429 = vld [vmem:[#allocation2] sm:$0xff]
          %v430 = vrot.slane %v429, 4
          %v431 = vadd.f32 %v429, %v430
          %v432 = vrot.slane %v431, 2
          %v433 = vadd.f32 %v431, %v432
          %v434 = vrot.slane %v433, 1
          %v435 = vadd.f32 %v433, %v434
          %436 = vst [vmem:[#allocation9] sm:$0x1] %v435
        $region60: #{tpu_custom_call.1} parent=31 // pred_fallthru
          _
        // Predicated region
        $region61: #{tpu_custom_call.1} parent=31 // pred_check
          %p437 = pneg %p138
        $region62: #{tpu_custom_call.1} parent=31 // pred_check_branch
          %439 = sbr.rel (%p437) target = $region64
        $region63: #{tpu_custom_call.1} parent=31 // pred_region
          %441 = vsyncadd [#allocation5], 0
          %s442 = scalar_lea.hbm %s3, %s23
          %s444 = sshll.u32 [#allocation9], 4
          %s445 = int_to_ptr.vmem [resolvable:$true] %s444
          %s446 = sshll.u32 %s442, 4
          %s447 = int_to_ptr.hbm [resolvable:$true] %s446
          %449 = dma.vmem_to_hbm [thread:$0]  %s445, 16, %s447, [#allocation5]
        $region64: #{tpu_custom_call.1} parent=31 // pred_fallthru
          _
        // Predicated region
        $region65: #{tpu_custom_call.1} parent=31 // pred_check
          %p450 = pneg %p138
        $region66: #{tpu_custom_call.1} parent=31 // pred_check_branch
          %452 = sbr.rel (%p450) target = $region68
        $region67: #{tpu_custom_call.1} parent=31 // pred_region
          %454 = dma.done [#allocation5], 16
        $region68: #{tpu_custom_call.1} parent=31 // pred_fallthru
          _
      $region32: #{tpu_custom_call.1} parent=5 // pred_fallthru
        _
      %p455 = scmp.le.s32.totalorder 2, %s14
      // Predicated region
      $region69: #{tpu_custom_call.1} parent=5 // pred_check
        %p456 = pneg %p455
      $region70: #{tpu_custom_call.1} parent=5 // pred_check_branch
        %458 = sbr.rel (%p456) target = $region72
      $region71: #{tpu_custom_call.1} parent=5 // pred_region
        %s459 = ssub.s32 %s14, 2
      $region72: #{tpu_custom_call.1} parent=5 // pred_fallthru
        _
    $region6: #{tpu_custom_call.1} parent=1 // loop_footer
      %s18 = sadd.s32 1, %s14
    $region7: #{tpu_custom_call.1} parent=1 // loop_footer_branch
      %13 = sbr.rel target = $region3
    $region8: #{tpu_custom_call.1} parent=1 // loop_exit
      _
    %460 = vsyncpa [#allocation4], 1
    %s461 = scalar_lea.sflag [#allocation4], 1
    %462 = vsyncpa %s461, 1
    %463 = vsyncpa [#allocation7], 1
    %s464 = scalar_lea.sflag [#allocation7], 1
    %465 = vsyncpa %s464, 1
    %466 = vsyncpa [#allocation5], 1
    %s467 = scalar_lea.sflag [#allocation5], 1
    %468 = vsyncpa %s467, 1

</llo_original>
